<compile_context>
chip_gen: v7x
topology: tpu7x:2x2x1
jax: 0.10.0
libtpu: 0.0.40
codegen_flags: <defaults>
</compile_context>

<pallas_src>
import jax
import jax.numpy as jnp
from jax.experimental import pallas as pl
from jax.experimental.pallas import tpu as pltpu


def _round_up(x: int, m: int) -> int:
    return ((x + m - 1) // m) * m


def _choose_tile_m(B: int, D: int, dbytes: int, c_pad: int) -> int:
    """Batch-tile rows from a byte budget, 128-row granularity."""
    target_bytes = 2 << 20                       # ~2 MiB of features per tile
    vmem_budget = 32 << 20                       # conservative (v7x scoped default)
    scratch = (c_pad * D + c_pad + D + 8) * 4 + (2 << 20)   # f32 accumulators + slack
    per_row = 2 * (D * dbytes + 4)               # double-buffered feature row + label
    max_by_vmem = max((vmem_budget - scratch) // per_row, 128)
    tm = max(target_bytes // max(D * dbytes, 1), 128)
    tm = min(tm, max_by_vmem)
    tm = max(128, (tm // 128) * 128)             # multiple of 128 (lane-dense labels,
    tm = min(tm, _round_up(B, 128))              #  and >= bf16 sublane packing of 16)
    return int(tm)


def trace_st_trace_sb_loss(features: jax.Array,
                           labels: jax.Array,
                           num_classes: int,
                           *,
                           tile_m: int | None = None) -> jax.Array:
    """loss = trace(St) / trace(Sb) computed with a single Pallas TPU kernel.

    features: [B, D] float features (bf16 / f32; streamed in native dtype)
    labels:   [B]    int class labels in [0, num_classes)
    returns:  scalar float32 loss
    """
    features = jnp.asarray(features)
    if not jnp.issubdtype(features.dtype, jnp.floating):
        features = features.astype(jnp.float32)
    labels = jnp.asarray(labels, jnp.int32)
    B, D = features.shape
    feat_dtype = features.dtype
    dbytes = feat_dtype.itemsize

    # Pad class axis to a sublane multiple; padded classes get count 0 and are
    # masked out of trace(Sb).
    c_pad = max(8, _round_up(num_classes, 8))

    if tile_m is None:
        tile_m = _choose_tile_m(B, D, dbytes, c_pad)
    tile_m = min(max(128, _round_up(int(tile_m), 128)), _round_up(B, 128))
    b_pad = _round_up(B, tile_m)
    num_tiles = b_pad // tile_m

    # Labels lane-dense: [1, B]; padded rows get label -1 (match no class) and
    # zero features (contribute nothing to any accumulator).
    lab_row = labels.reshape(1, B)
    if b_pad != B:
        features = jnp.pad(features, ((0, b_pad - B), (0, 0)))
        lab_row = jnp.pad(lab_row, ((0, 0), (0, b_pad - B)), constant_values=-1)

    n_samples = float(B)

    def kernel(x_ref, lab_ref, loss_ref, cls_sum, cnt, sq):
        i = pl.program_id(0)

        @pl.when(i == 0)
        def _init():
            cls_sum[...] = jnp.zeros_like(cls_sum)
            cnt[...] = jnp.zeros_like(cnt)
            sq[...] = jnp.zeros_like(sq)

        x = x_ref[...]                                   # [tile_m, D], native dtype
        lab = lab_ref[...]                               # [1, tile_m] i32

        # Transposed one-hot [c_pad, tile_m]: iota over sublanes, labels
        # broadcast over lanes -> standard last-dim MXU contraction below.
        cls_ids = jax.lax.broadcasted_iota(jnp.int32, (c_pad, tile_m), 0)
        hit = lab == cls_ids                             # [c_pad, tile_m] bool
        onehot_t = hit.astype(feat_dtype)                # MXU operand in feature dtype

        # Per-class feature sums: (c_pad, tile_m) @ (tile_m, D) on the MXU,
        # f32 accumulation into resident scratch.
        cls_sum[...] += jnp.dot(onehot_t, x, preferred_element_type=jnp.float32)

        # Per-class counts (exact in f32 for B < 2^24).
        cnt[...] += jnp.sum(hit.astype(jnp.float32), axis=1, keepdims=True)  # [c_pad,1]

        # Lane-wise squared-norm accumulator; cross-lane reduce deferred.
        xf = x.astype(jnp.float32)
        sq[...] += jnp.sum(xf * xf, axis=0, keepdims=True)                   # [1, D]

        @pl.when(i == pl.num_programs(0) - 1)
        def _finalize():
            n = jnp.float32(n_samples)
            csum = cls_sum[...]                                   # [c_pad, D]
            counts = cnt[...]                                     # [c_pad, 1]

            # Global feature sum derived from the class sums (each real row
            # lands in exactly one class; padded rows are zero).
            total = jnp.sum(csum, axis=0, keepdims=True)          # [1, D]
            mu_sq = jnp.sum(total * total, keepdims=True) / (n * n)   # [1, 1]

            # trace(St) = E||h||^2 - ||mu||^2
            tr_st = jnp.sum(sq[...], keepdims=True) / n - mu_sq       # [1, 1]

            # trace(Sb) = (1/N) * sum_c ||csum_c||^2 / n_c - ||mu||^2
            per_cls_sq = jnp.sum(csum * csum, axis=1, keepdims=True)  # [c_pad, 1]
            inv_counts = jnp.where(counts > 0.5,
                                   1.0 / jnp.maximum(counts, 1.0), 0.0)
            sb_sum = jnp.sum(inv_counts * per_cls_sq, keepdims=True)  # [1, 1]
            tr_sb = sb_sum / n - mu_sq

            loss_ref[...] = tr_st / tr_sb

    # Explicit VMEM budget: double-buffered inputs + resident scratch + slack.
    in_bytes = 2 * tile_m * (D * dbytes + 4)
    scratch_bytes = (c_pad * D + c_pad + D) * 4
    vmem_limit = int(min(in_bytes + scratch_bytes + (4 << 20), 64 << 20))
    vmem_limit = max(vmem_limit, 8 << 20)

    out = pl.pallas_call(
        kernel,
        out_shape=jax.ShapeDtypeStruct((1, 1), jnp.float32),
        grid=(num_tiles,),
        in_specs=[
            pl.BlockSpec((tile_m, D), lambda i: (i, 0)),      # features (native dtype)
            pl.BlockSpec((1, tile_m), lambda i: (0, i)),      # labels, lane-dense
        ],
        out_specs=pl.BlockSpec((1, 1), lambda i: (0, 0)),
        scratch_shapes=[
            pltpu.VMEM((c_pad, D), jnp.float32),   # per-class feature sums
            pltpu.VMEM((c_pad, 1), jnp.float32),   # per-class counts
            pltpu.VMEM((1, D), jnp.float32),       # lane-wise sum of h_i^2
        ],
        compiler_params=pltpu.CompilerParams(
            # single grid axis carries resident accumulators -> reduction axis
            dimension_semantics=("arbitrary",),
            vmem_limit_bytes=vmem_limit,
        ),
        cost_estimate=pl.CostEstimate(
            flops=2 * b_pad * c_pad * D + 3 * b_pad * D,
            transcendentals=0,
            bytes_accessed=b_pad * D * dbytes + b_pad * 4 + 4,
        ),
    )(features, lab_row)
    return out[0, 0]


def reference_loss(features, labels, num_classes):
    x = features.astype(jnp.float32)
    n = x.shape[0]
    mu = jnp.mean(x, axis=0)
    tr_st = jnp.mean(jnp.sum((x - mu) ** 2, axis=1))
    onehot = jax.nn.one_hot(labels, num_classes, dtype=jnp.float32)
    counts = jnp.sum(onehot, axis=0)
    csum = onehot.T @ x
    mu_c = csum / jnp.maximum(counts, 1.0)[:, None]
    tr_sb = jnp.sum((counts / n) * jnp.sum((mu_c - mu[None, :]) ** 2, axis=1))
    return tr_st / tr_sb


if __name__ == "__main__":
    num_classes = 4
    key = jax.random.PRNGKey(0)
    kx, kl, kx2, kl2 = jax.random.split(key, 4)

    # f32 path: batch not a multiple of the tile, forced tile_m=128 -> 3 grid
    # steps (exercises init / accumulate / finalize and the row padding).
    B1, D1 = 300, 32
    feats32 = jax.random.normal(kx, (B1, D1), dtype=jnp.float32)
    labs1 = jax.random.randint(kl, (B1,), 0, num_classes, dtype=jnp.int32)
    loss32 = jax.block_until_ready(
        trace_st_trace_sb_loss(feats32, labs1, num_classes, tile_m=128))
    ref32 = reference_loss(feats32, labs1, num_classes)
    assert loss32.shape == (), f"expected scalar, got {loss32.shape}"
    assert jnp.isfinite(loss32), "non-finite loss (f32 path)"
    assert jnp.allclose(loss32, ref32, rtol=1e-3, atol=1e-3), (
        f"f32 mismatch vs reference: {loss32} vs {ref32}")

    # bf16 path: native-dtype streaming (no host f32 upcast), auto tile size.
    B2, D2 = 200, 128
    feats16 = jax.random.normal(kx2, (B2, D2), dtype=jnp.float32).astype(jnp.bfloat16)
    labs2 = jax.random.randint(kl2, (B2,), 0, num_classes, dtype=jnp.int32)
    loss16 = jax.block_until_ready(
        trace_st_trace_sb_loss(feats16, labs2, num_classes))
    ref16 = reference_loss(feats16.astype(jnp.float32), labs2, num_classes)
    assert loss16.shape == (), f"expected scalar, got {loss16.shape}"
    assert jnp.isfinite(loss16), "non-finite loss (bf16 path)"
    assert jnp.allclose(loss16, ref16, rtol=5e-3, atol=5e-3), (
        f"bf16 mismatch vs reference: {loss16} vs {ref16}")

    print("KERNEL_OK")
</pallas_src>

<mosaic_0001>
module attributes {stable_mosaic.version = 11 : i64} {
  func.func @kernel(%arg0: i32, %arg1: memref<128x32xf32, #tpu.memory_space<vmem>>, %arg2: memref<1x128xi32, #tpu.memory_space<vmem>>, %arg3: memref<1x1xf32, #tpu.memory_space<vmem>>, %arg4: memref<8x32xf32, #tpu.memory_space<vmem>>, %arg5: memref<8x1xf32, #tpu.memory_space<vmem>>, %arg6: memref<1x32xf32, #tpu.memory_space<vmem>>) attributes {dimension_semantics = [#tpu.dimension_semantics<arbitrary>], iteration_bounds = array<i64: 3>, scalar_prefetch = 0 : i64, scratch_operands = 3 : i64, tpu.core_type = #tpu.core_type<tc>, window_params = [{transform_indices = @transform_0, window_bounds = array<i64: 128, 32>}, {transform_indices = @transform_1, window_bounds = array<i64: 1, 128>}, {pipeline_mode = #tpu.pipeline_mode<synchronous>, transform_indices = @transform_2, window_bounds = array<i64: 1, 1>}]} {
    %c0_i32 = arith.constant 0 : i32
    %0 = arith.cmpi eq, %arg0, %c0_i32 : i32
    %1 = arith.extui %0 : i1 to i32
    %c0_i32_0 = arith.constant 0 : i32
    %2 = arith.cmpi ne, %1, %c0_i32_0 : i32
    scf.if %2 {
      %cst_19 = arith.constant 0.000000e+00 : f32
      %30 = vector.broadcast %cst_19 : f32 to vector<8x32xf32>
      %c0_20 = arith.constant 0 : index
      %c0_21 = arith.constant 0 : index
      %31 = vector.load %arg4[%c0_20, %c0_21] : memref<8x32xf32, #tpu.memory_space<vmem>>, vector<8x32xf32>
      tpu.vector_store %arg4[%c0_20, %c0_21], %30 {strides = array<i32>} : memref<8x32xf32, #tpu.memory_space<vmem>>, vector<8x32xf32>,
      %cst_22 = arith.constant 0.000000e+00 : f32
      %32 = vector.broadcast %cst_22 : f32 to vector<8x1xf32>
      %c0_23 = arith.constant 0 : index
      %c0_24 = arith.constant 0 : index
      %33 = vector.load %arg5[%c0_23, %c0_24] : memref<8x1xf32, #tpu.memory_space<vmem>>, vector<8x1xf32>
      tpu.vector_store %arg5[%c0_23, %c0_24], %32 {strides = array<i32>} : memref<8x1xf32, #tpu.memory_space<vmem>>, vector<8x1xf32>,
      %cst_25 = arith.constant 0.000000e+00 : f32
      %34 = vector.broadcast %cst_25 : f32 to vector<1x32xf32>
      %c0_26 = arith.constant 0 : index
      %c0_27 = arith.constant 0 : index
      %35 = vector.load %arg6[%c0_26, %c0_27] : memref<1x32xf32, #tpu.memory_space<vmem>>, vector<1x32xf32>
      tpu.vector_store %arg6[%c0_26, %c0_27], %34 {strides = array<i32>} : memref<1x32xf32, #tpu.memory_space<vmem>>, vector<1x32xf32>,
    } else {
    }
    %c0 = arith.constant 0 : index
    %c0_1 = arith.constant 0 : index
    %3 = vector.load %arg1[%c0, %c0_1] : memref<128x32xf32, #tpu.memory_space<vmem>>, vector<128x32xf32>
    %c0_2 = arith.constant 0 : index
    %c0_3 = arith.constant 0 : index
    %4 = vector.load %arg2[%c0_2, %c0_3] : memref<1x128xi32, #tpu.memory_space<vmem>>, vector<1x128xi32>
    %5 = tpu.iota {dimensions = array<i32: 0>} : vector<8x128xi32>
    %6 = vector.broadcast %4 : vector<1x128xi32> to vector<8x128xi32>
    %7 = arith.cmpi eq, %6, %5 : vector<8x128xi32>
    %8 = arith.extui %7 : vector<8x128xi1> to vector<8x128xi32>
    %9 = arith.sitofp %8 : vector<8x128xi32> to vector<8x128xf32>
    %c0_4 = arith.constant 0 : index
    %c0_5 = arith.constant 0 : index
    %10 = vector.load %arg4[%c0_4, %c0_5] : memref<8x32xf32, #tpu.memory_space<vmem>>, vector<8x32xf32>
    %cst = arith.constant dense<0.000000e+00> : vector<8x32xf32>
    %11 = tpu.matmul %9, %3, %cst {dimension_numbers = #tpu.dot_dimension_numbers<[1], [0], [0], [1], [0, 0, 1, 1], [], []>} : vector<8x128xf32>, vector<128x32xf32>, vector<8x32xf32> -> vector<8x32xf32>
    %12 = arith.addf %10, %11 : vector<8x32xf32>
    %c0_6 = arith.constant 0 : index
    %c0_7 = arith.constant 0 : index
    %13 = vector.load %arg4[%c0_6, %c0_7] : memref<8x32xf32, #tpu.memory_space<vmem>>, vector<8x32xf32>
    tpu.vector_store %arg4[%c0_6, %c0_7], %12 {strides = array<i32>} : memref<8x32xf32, #tpu.memory_space<vmem>>, vector<8x32xf32>,
    %c0_8 = arith.constant 0 : index
    %c0_9 = arith.constant 0 : index
    %14 = vector.load %arg5[%c0_8, %c0_9] : memref<8x1xf32, #tpu.memory_space<vmem>>, vector<8x1xf32>
    %15 = arith.extui %7 : vector<8x128xi1> to vector<8x128xi32>
    %16 = arith.sitofp %15 : vector<8x128xi32> to vector<8x128xf32>
    %cst_10 = arith.constant dense<0.000000e+00> : vector<8xf32>
    %17 = vector.multi_reduction <add>, %16, %cst_10 [1] : vector<8x128xf32> to vector<8xf32>
    %18 = vector.shape_cast %17 : vector<8xf32> to vector<8x1xf32>
    %19 = arith.addf %14, %18 : vector<8x1xf32>
    %c0_11 = arith.constant 0 : index
    %c0_12 = arith.constant 0 : index
    %20 = vector.load %arg5[%c0_11, %c0_12] : memref<8x1xf32, #tpu.memory_space<vmem>>, vector<8x1xf32>
    tpu.vector_store %arg5[%c0_11, %c0_12], %19 {strides = array<i32>} : memref<8x1xf32, #tpu.memory_space<vmem>>, vector<8x1xf32>,
    %c0_13 = arith.constant 0 : index
    %c0_14 = arith.constant 0 : index
    %21 = vector.load %arg6[%c0_13, %c0_14] : memref<1x32xf32, #tpu.memory_space<vmem>>, vector<1x32xf32>
    %22 = arith.mulf %3, %3 : vector<128x32xf32>
    %cst_15 = arith.constant dense<0.000000e+00> : vector<32xf32>
    %23 = vector.multi_reduction <add>, %22, %cst_15 [0] : vector<128x32xf32> to vector<32xf32>
    %24 = vector.shape_cast %23 : vector<32xf32> to vector<1x32xf32>
    %25 = arith.addf %21, %24 : vector<1x32xf32>
    %c0_16 = arith.constant 0 : index
    %c0_17 = arith.constant 0 : index
    %26 = vector.load %arg6[%c0_16, %c0_17] : memref<1x32xf32, #tpu.memory_space<vmem>>, vector<1x32xf32>
    tpu.vector_store %arg6[%c0_16, %c0_17], %25 {strides = array<i32>} : memref<1x32xf32, #tpu.memory_space<vmem>>, vector<1x32xf32>,
    %c2_i32 = arith.constant 2 : i32
    %27 = arith.cmpi eq, %arg0, %c2_i32 : i32
    %28 = arith.extui %27 : i1 to i32
    %c0_i32_18 = arith.constant 0 : i32
    %29 = arith.cmpi ne, %28, %c0_i32_18 : i32
    scf.if %29 {
      %c0_19 = arith.constant 0 : index
      %c0_20 = arith.constant 0 : index
      %30 = vector.load %arg4[%c0_19, %c0_20] : memref<8x32xf32, #tpu.memory_space<vmem>>, vector<8x32xf32>
      %c0_21 = arith.constant 0 : index
      %c0_22 = arith.constant 0 : index
      %31 = vector.load %arg5[%c0_21, %c0_22] : memref<8x1xf32, #tpu.memory_space<vmem>>, vector<8x1xf32>
      %cst_23 = arith.constant dense<0.000000e+00> : vector<32xf32>
      %32 = vector.multi_reduction <add>, %30, %cst_23 [0] : vector<8x32xf32> to vector<32xf32>
      %33 = vector.shape_cast %32 : vector<32xf32> to vector<1x32xf32>
      %34 = arith.mulf %33, %33 : vector<1x32xf32>
      %35 = vector.shape_cast %34 : vector<1x32xf32> to vector<1x1x32xf32>
      %cst_24 = arith.constant dense<0.000000e+00> : vector<1xf32>
      %36 = vector.multi_reduction <add>, %35, %cst_24 [1, 2] : vector<1x1x32xf32> to vector<1xf32>
      %37 = vector.shape_cast %36 : vector<1xf32> to vector<1x1x1xf32>
      %38 = vector.extract %37[0, 0, 0] : f32 from vector<1x1x1xf32>
      %39 = vector.broadcast %38 : f32 to vector<1x1xf32>
      %cst_25 = arith.constant 3.000000e+02 : f32
      %cst_26 = arith.constant 3.000000e+02 : f32
      %40 = arith.mulf %cst_25, %cst_26 : f32
      %41 = vector.broadcast %40 : f32 to vector<1x1xf32>
      %42 = arith.divf %39, %41 : vector<1x1xf32>
      %c0_27 = arith.constant 0 : index
      %c0_28 = arith.constant 0 : index
      %43 = vector.load %arg6[%c0_27, %c0_28] : memref<1x32xf32, #tpu.memory_space<vmem>>, vector<1x32xf32>
      %44 = vector.shape_cast %43 : vector<1x32xf32> to vector<1x1x32xf32>
      %cst_29 = arith.constant dense<0.000000e+00> : vector<1xf32>
      %45 = vector.multi_reduction <add>, %44, %cst_29 [1, 2] : vector<1x1x32xf32> to vector<1xf32>
      %46 = vector.shape_cast %45 : vector<1xf32> to vector<1x1x1xf32>
      %47 = vector.extract %46[0, 0, 0] : f32 from vector<1x1x1xf32>
      %48 = vector.broadcast %47 : f32 to vector<1x1xf32>
      %cst_30 = arith.constant 3.000000e+02 : f32
      %49 = vector.broadcast %cst_30 : f32 to vector<1x1xf32>
      %50 = arith.divf %48, %49 : vector<1x1xf32>
      %51 = arith.subf %50, %42 : vector<1x1xf32>
      %52 = arith.mulf %30, %30 : vector<8x32xf32>
      %cst_31 = arith.constant dense<0.000000e+00> : vector<8xf32>
      %53 = vector.multi_reduction <add>, %52, %cst_31 [1] : vector<8x32xf32> to vector<8xf32>
      %54 = vector.shape_cast %53 : vector<8xf32> to vector<8x1xf32>
      %cst_32 = arith.constant 5.000000e-01 : f32
      %55 = vector.broadcast %cst_32 : f32 to vector<8x1xf32>
      %56 = arith.cmpf ogt, %31, %55 : vector<8x1xf32>
      %cst_33 = arith.constant 1.000000e+00 : f32
      %57 = vector.broadcast %cst_33 : f32 to vector<8x1xf32>
      %58 = arith.maximumf %31, %57 : vector<8x1xf32>
      %cst_34 = arith.constant 1.000000e+00 : f32
      %59 = vector.broadcast %cst_34 : f32 to vector<8x1xf32>
      %60 = arith.divf %59, %58 : vector<8x1xf32>
      %cst_35 = arith.constant 0.000000e+00 : f32
      %61 = vector.broadcast %cst_35 : f32 to vector<8x1xf32>
      %62 = arith.select %56, %60, %61 : vector<8x1xi1>, vector<8x1xf32>
      %63 = arith.mulf %62, %54 : vector<8x1xf32>
      %64 = vector.shape_cast %63 : vector<8x1xf32> to vector<1x8x1xf32>
      %cst_36 = arith.constant dense<0.000000e+00> : vector<1xf32>
      %65 = vector.multi_reduction <add>, %64, %cst_36 [1, 2] : vector<1x8x1xf32> to vector<1xf32>
      %66 = vector.shape_cast %65 : vector<1xf32> to vector<1x1x1xf32>
      %67 = vector.extract %66[0, 0, 0] : f32 from vector<1x1x1xf32>
      %68 = vector.broadcast %67 : f32 to vector<1x1xf32>
      %cst_37 = arith.constant 3.000000e+02 : f32
      %69 = vector.broadcast %cst_37 : f32 to vector<1x1xf32>
      %70 = arith.divf %68, %69 : vector<1x1xf32>
      %71 = arith.subf %70, %42 : vector<1x1xf32>
      %72 = arith.divf %51, %71 : vector<1x1xf32>
      %c0_38 = arith.constant 0 : index
      %c0_39 = arith.constant 0 : index
      %73 = vector.load %arg3[%c0_38, %c0_39] : memref<1x1xf32, #tpu.memory_space<vmem>>, vector<1x1xf32>
      tpu.vector_store %arg3[%c0_38, %c0_39], %72 {strides = array<i32>} : memref<1x1xf32, #tpu.memory_space<vmem>>, vector<1x1xf32>,
    } else {
    }
    return
  }
  func.func @transform_0(%arg0: i32) -> (i32, i32) {
    %c0_i32 = arith.constant 0 : i32
    %c0_i32_0 = arith.constant 0 : i32
    return %arg0, %c0_i32 : i32, i32
  }
  func.func @transform_1(%arg0: i32) -> (i32, i32) {
    %c0_i32 = arith.constant 0 : i32
    %c0_i32_0 = arith.constant 0 : i32
    return %c0_i32, %arg0 : i32, i32
  }
  func.func @transform_2(%arg0: i32) -> (i32, i32) {
    %c0_i32 = arith.constant 0 : i32
    %c0_i32_0 = arith.constant 0 : i32
    %c0_i32_1 = arith.constant 0 : i32
    return %c0_i32, %c0_i32_0 : i32, i32
  }
}

</mosaic_0001>

<llo_original>
// kernel: tpu_custom_call.1
$region0: #{tpu_custom_call.1}
  #allocation0 [shape = 'u32[]', space=smem, size = 0x4, offset = 0x4, fixed_abs, tag = 'smem constant byte address 0x4 - core index']
  #allocation1 [shape = 'u32[144,128]{1,0:T(1,128)}', space=vmem, size = 0x12000, scoped, tag = 'internal scratch']
  #allocation2 [shape = 'f32[8,32]{1,0:T(8,128)}', space=vmem, size = 0x1000, scoped, tag = 'scratch operand']
  #allocation3 [shape = 'f32[8,1]{1,0:T(8,128)}', space=vmem, size = 0x1000, scoped, tag = 'scratch operand']
  #allocation4 [shape = 'f32[1,32]{1,0:T(1,128)}', space=vmem, size = 0x200, scoped, tag = 'scratch operand']
  %s0 = inlined_call_operand.vmem [shape: f32[384,32], index: 0, kind: input, shape index: {}]
  %s1 = inlined_call_operand.vmem [shape: s32[1,384], index: 1, kind: input, shape index: {}]
  %s2 = inlined_call_operand.hbm [shape: f32[1,1], index: 2, kind: output, shape index: {}]
  %s3 = sld [smem:[#allocation0]]
  $region49: #{tpu_custom_call.1} parent=0
    _
  %s5 = ssub.s32 1, %s3
  %s6 = scalar_select 0, %s5, %s3
  $region1: #{tpu_custom_call.1} parent=0
    #allocation5 [shape = 'u8[512]{0}', space=vmem, size = 0x400, scoped, tag = 'output window, operand 0, single buffered']
    #allocation6 [shape = 's32[2]{0}', space=sflag, size = 0x8, scoped, tag = 'scoped memory for tpu_custom_call.1']
    %7 = vsyncpa [#allocation6], 0
    loop: start=0, step=1, limit=5
    $region2: #{tpu_custom_call.1} parent=1 // loop_pre_header
      _
    $region3: #{tpu_custom_call.1} parent=1 // loop_header
      %s9 = sphi 0, %s13
      %p10 = scmp.ge.s32.totalorder %s9, 5
      %s19 = sphi 0, %s21
      %s22 = sphi 0, %s19
      %s23 = sphi 0, %s22
      %s39 = sphi 0, %s23
      %s45 = sphi 0, %s47
      %s48 = sphi 0, %s45
      %s49 = sphi 0, %s48
      %s65 = sphi 0, %s49
      %s69 = sphi 0, %s69
      %s71 = sphi 0, %s69
      %s72 = sphi 0, %s71
      %s86 = sphi 0, %s72
    $region4: #{tpu_custom_call.1} parent=1 // loop_header_branch
      %12 = sbr.rel (%p10) target = $region8
    $region5: #{tpu_custom_call.1} parent=1 // loop_body
      %s14 = ssub.s32 %s9, 1
      %s15 = ssub.s32 %s9, 2
      %s16 = sadd.s32 %s9, 1
      %s17 = ssub.s32 %s9, %s16
      %p18 = scmp.eq.s32.totalorder %s17, 0
      %s20 = sadd.s32 %s19, 1
      %s21 = scalar_select %p18, %s19, %s20
      %p24 = pneg %p18
      %p25 = scmp.eq.s32.totalorder %s9, 2
      %p26 = por %p24, %p25
      %p27 = scmp.ne.s32.totalorder %s19, %s22
      %p28 = scmp.eq.s32.totalorder %s9, 0
      %p29 = por %p27, %p28
      %p30 = scmp.ne.s32.totalorder %s19, %s22
      %p31 = scmp.eq.s32.totalorder %s14, 2
      %p32 = por %p30, %p31
      %p33 = scmp.ne.s32.totalorder %s22, %s23
      %p34 = scmp.eq.s32.totalorder %s14, 0
      %p35 = por %p33, %p34
      %p36 = scmp.ne.s32.totalorder %s22, %s23
      %p37 = scmp.eq.s32.totalorder %s15, 2
      %p38 = por %p36, %p37
      %p40 = scmp.ne.s32.totalorder %s23, %s39
      %p41 = scmp.eq.s32.totalorder %s15, 0
      %p42 = por %p40, %p41
      %s43 = ssub.s32 %s9, %s16
      %p44 = scmp.eq.s32.totalorder %s43, 0
      %s46 = sadd.s32 %s45, 1
      %s47 = scalar_select %p44, %s45, %s46
      %p50 = pneg %p44
      %p51 = scmp.eq.s32.totalorder %s9, 2
      %p52 = por %p50, %p51
      %p53 = scmp.ne.s32.totalorder %s45, %s48
      %p54 = scmp.eq.s32.totalorder %s9, 0
      %p55 = por %p53, %p54
      %p56 = scmp.ne.s32.totalorder %s45, %s48
      %p57 = scmp.eq.s32.totalorder %s14, 2
      %p58 = por %p56, %p57
      %p59 = scmp.ne.s32.totalorder %s48, %s49
      %p60 = scmp.eq.s32.totalorder %s14, 0
      %p61 = por %p59, %p60
      %p62 = scmp.ne.s32.totalorder %s48, %s49
      %p63 = scmp.eq.s32.totalorder %s15, 2
      %p64 = por %p62, %p63
      %p66 = scmp.ne.s32.totalorder %s49, %s65
      %p67 = scmp.eq.s32.totalorder %s15, 0
      %p68 = por %p66, %p67
      %s70 = sadd.s32 %s69, 1
      %p73 = scmp.eq.s32.totalorder %s9, 2
      %p74 = scmp.ne.s32.totalorder %s69, %s71
      %p75 = scmp.eq.s32.totalorder %s9, 0
      %p76 = por %p74, %p75
      %p77 = scmp.ne.s32.totalorder %s69, %s71
      %p78 = scmp.eq.s32.totalorder %s14, 2
      %p79 = por %p77, %p78
      %p80 = scmp.ne.s32.totalorder %s71, %s72
      %p81 = scmp.eq.s32.totalorder %s14, 0
      %p82 = por %p80, %p81
      %p83 = scmp.ne.s32.totalorder %s71, %s72
      %p84 = scmp.eq.s32.totalorder %s15, 2
      %p85 = por %p83, %p84
      %p87 = scmp.ne.s32.totalorder %s72, %s86
      %p88 = scmp.eq.s32.totalorder %s15, 0
      %p89 = por %p87, %p88
      %p90 = scmp.le.s32.totalorder 1, %s9
      %p91 = scmp.lt.s32.totalorder %s9, 4
      %p92 = pnand %p90, %p91
      %p93 = pneg %p92
      // Predicated region
      $region9: #{tpu_custom_call.1} parent=5 // pred_check
        _
      $region10: #{tpu_custom_call.1} parent=5 // pred_check_branch
        %95 = sbr.rel (%p92) target = $region12
      $region11: #{tpu_custom_call.1} parent=5 // pred_region
        %s96 = ssub.s32 %s9, 1
      $region12: #{tpu_custom_call.1} parent=5 // pred_fallthru
        _
      %p97 = scmp.lt.s32.totalorder %s9, 3
      // Predicated region
      $region13: #{tpu_custom_call.1} parent=5 // pred_check
        %p98 = pneg %p97
      $region14: #{tpu_custom_call.1} parent=5 // pred_check_branch
        %100 = sbr.rel (%p98) target = $region16
      $region15: #{tpu_custom_call.1} parent=5 // pred_region
        // Predicated region
        $region17: #{tpu_custom_call.1} parent=15 // pred_check
          %p101 = pneg %p29
        $region18: #{tpu_custom_call.1} parent=15 // pred_check_branch
          %103 = sbr.rel (%p101) target = $region20
        $region19: #{tpu_custom_call.1} parent=15 // pred_region
          %s104 = smul.u32 16, %s9
          %p105 = scmp.lt.s32.totalorder %s104, 47
          %s106 = scalar_select %p105, %s104, 47
          %s107 = smul.addr %s106, 8
          %s108 = scalar_lea.vmem %s0, %s107
          %s109 = smul.u32 16, %s9
        $region20: #{tpu_custom_call.1} parent=15 // pred_fallthru
          _
        // Predicated region
        $region21: #{tpu_custom_call.1} parent=15 // pred_check
          %p110 = pneg %p55
        $region22: #{tpu_custom_call.1} parent=15 // pred_check_branch
          %112 = sbr.rel (%p110) target = $region24
        $region23: #{tpu_custom_call.1} parent=15 // pred_region
          %p113 = scmp.lt.s32.totalorder %s9, 2
          %s114 = scalar_select %p113, %s9, 2
          %s115 = scalar_lea.vmem %s1, %s114
        $region24: #{tpu_custom_call.1} parent=15 // pred_fallthru
          _
      $region16: #{tpu_custom_call.1} parent=5 // pred_fallthru
        _
      %p116 = scmp.le.s32.totalorder 1, %s9
      %p117 = scmp.lt.s32.totalorder %s9, 4
      %p118 = pnand %p116, %p117
      %p119 = pneg %p118
      // Predicated region
      $region25: #{tpu_custom_call.1} parent=5 // pred_check
        _
      $region26: #{tpu_custom_call.1} parent=5 // pred_check_branch
        %121 = sbr.rel (%p118) target = $region28
      $region27: #{tpu_custom_call.1} parent=5 // pred_region
        %s122 = ssub.s32 %s9, 1
        %s123 = smul.u32 16, %s14
        %p124 = scmp.lt.s32.totalorder %s123, 47
        %s125 = scalar_select %p124, %s123, 47
        %s126 = smul.addr %s125, 8
        %s127 = scalar_lea.vmem %s0, %s126
        %p128 = pneg %p35
        %p129 = pneg %p32
        %p130 = scmp.lt.s32.totalorder %s14, 2
        %s131 = scalar_select %p130, %s14, 2
        %s132 = scalar_lea.vmem %s1, %s131
        %p133 = pneg %p61
        %p134 = pneg %p58
        %p135 = pneg %p82
        %p136 = pneg %p79
        %s137 = smul.u32 16, %s14
        %p138 = scmp.lt.s32.totalorder %s137, 47
        %s139 = scalar_select %p138, %s137, 47
        %s140 = smul.addr %s139, 8
        %s141 = scalar_lea.vmem %s0, %s140
        %s142 = smul.u32 16, %s14
        %p143 = scmp.lt.s32.totalorder %s14, 2
        %s144 = scalar_select %p143, %s14, 2
        %s145 = scalar_lea.vmem %s1, %s144
        %p146 = scmp.eq.s32.totalorder %s14, 0
        // Predicated region
        $region29: #{tpu_custom_call.1} parent=27 // pred_check
          %p147 = pneg %p146
        $region30: #{tpu_custom_call.1} parent=27 // pred_check_branch
          %149 = sbr.rel (%p147) target = $region32
        $region31: #{tpu_custom_call.1} parent=27 // pred_region
          %vm150 = vcmask 261120
          %151 = vst.msk [vmem:[#allocation2] sm:$0xff] %vm150, 0.0
          %vm152 = vcmask 7168
          %153 = vst.msk [vmem:[#allocation3] sm:$0xff] %vm152, 0.0
          %vm154 = vcmask 253952
          %155 = vst.msk [vmem:[#allocation4] sm:$0x1] %vm154, 0.0
        $region32: #{tpu_custom_call.1} parent=27 // pred_fallthru
          _
        %v156 = vld [vmem:[%s141] sm:$0xff]
        %v157 = vld [vmem:[%s141 + $0x8] sm:$0xff]
        %v158 = vld [vmem:[%s141 + $0x10] sm:$0xff]
        %v159 = vld [vmem:[%s141 + $0x18] sm:$0xff]
        %v160 = vld [vmem:[%s141 + $0x20] sm:$0xff]
        %v161 = vld [vmem:[%s141 + $0x28] sm:$0xff]
        %v162 = vld [vmem:[%s141 + $0x30] sm:$0xff]
        %v163 = vld [vmem:[%s141 + $0x38] sm:$0xff]
        %v164 = vld [vmem:[%s141 + $0x40] sm:$0xff]
        %v165 = vld [vmem:[%s141 + $0x48] sm:$0xff]
        %v166 = vld [vmem:[%s141 + $0x50] sm:$0xff]
        %v167 = vld [vmem:[%s141 + $0x58] sm:$0xff]
        %v168 = vld [vmem:[%s141 + $0x60] sm:$0xff]
        %v169 = vld [vmem:[%s141 + $0x68] sm:$0xff]
        %v170 = vld [vmem:[%s141 + $0x70] sm:$0xff]
        %v171 = vld [vmem:[%s141 + $0x78] sm:$0xff]
        %v172 = vld [vmem:[%s145] sm:$0x1]
        %v173 = vlaneseq
        %v174 = vshrl.u32 %v173, 7
        %v175 = vlaneseq
        %v176 = vshrl.u32 %v175, 7
        %v177 = vsub.s32 0, %v176
        %v178 = vrot.slane %v172, %v177
        %vm179 = vcmp.eq.s32.totalorder %v178, %v174
        %v180 = vsel %vm179, 1, 0
        %v181 = vcvt.s32.f32 %v180
        %v182 = vld [vmem:[#allocation2] sm:$0xff]
        %183 = vmatprep.subr.mxu0 0.0
        %184 = vmatpush1.msra.mxu0 %v156
        %185 = vmatprep.subr.mxu0 0.0
        %186 = vmatpush1.msra.mxu0 %v157
        %187 = vmatprep.subr.mxu0 0.0
        %188 = vmatpush1.msra.mxu0 %v158
        %189 = vmatprep.subr.mxu0 0.0
        %190 = vmatpush1.msra.mxu0 %v159
        %191 = vmatprep.subr.mxu0 0.0
        %192 = vmatpush1.msra.mxu0 %v160
        %193 = vmatprep.subr.mxu0 0.0
        %194 = vmatpush1.msra.mxu0 %v161
        %195 = vmatprep.subr.mxu0 0.0
        %196 = vmatpush1.msra.mxu0 %v162
        %197 = vmatprep.subr.mxu0 0.0
        %198 = vmatpush1.msra.mxu0 %v163
        %199 = vmatprep.subr.mxu0 0.0
        %200 = vmatpush1.msra.mxu0 %v164
        %201 = vmatprep.subr.mxu0 0.0
        %202 = vmatpush1.msra.mxu0 %v165
        %203 = vmatprep.subr.mxu0 0.0
        %204 = vmatpush1.msra.mxu0 %v166
        %205 = vmatprep.subr.mxu0 0.0
        %206 = vmatpush1.msra.mxu0 %v167
        %207 = vmatprep.subr.mxu0 0.0
        %208 = vmatpush1.msra.mxu0 %v168
        %209 = vmatprep.subr.mxu0 0.0
        %210 = vmatpush1.msra.mxu0 %v169
        %211 = vmatprep.subr.mxu0 0.0
        %212 = vmatpush1.msra.mxu0 %v170
        %213 = vmatprep.subr.mxu0 0.0
        %214 = vmatpush1.msra.mxu0 %v171
        %215 = vmatprep.subr.mxu0 0.0
        %216 = vmatpush1.msra.mxu0 0.0
        %217 = vmatprep.subr.mxu0 0.0
        %218 = vmatpush1.msra.mxu0 0.0
        %219 = vmatprep.subr.mxu0 0.0
        %220 = vmatpush1.msra.mxu0 0.0
        %221 = vmatprep.subr.mxu0 0.0
        %222 = vmatpush1.msra.mxu0 0.0
        %223 = vmatprep.subr.mxu0 0.0
        %224 = vmatpush1.msra.mxu0 0.0
        %225 = vmatprep.subr.mxu0 0.0
        %226 = vmatpush1.msra.mxu0 0.0
        %227 = vmatprep.subr.mxu0 0.0
        %228 = vmatpush1.msra.mxu0 0.0
        %229 = vmatprep.subr.mxu0 0.0
        %230 = vmatpush1.msra.mxu0 0.0
        %231 = vmatprep.subr.mxu0 0.0
        %232 = vmatpush1.msra.mxu0 0.0
        %233 = vmatprep.subr.mxu0 0.0
        %234 = vmatpush1.msra.mxu0 0.0
        %235 = vmatprep.subr.mxu0 0.0
        %236 = vmatpush1.msra.mxu0 0.0
        %237 = vmatprep.subr.mxu0 0.0
        %238 = vmatpush1.msra.mxu0 0.0
        %239 = vmatprep.subr.mxu0 0.0
        %240 = vmatpush1.msra.mxu0 0.0
        %241 = vmatprep.subr.mxu0 0.0
        %242 = vmatpush1.msra.mxu0 0.0
        %243 = vmatprep.subr.mxu0 0.0
        %244 = vmatpush1.msra.mxu0 0.0
        %245 = vmatprep.subr.mxu0 0.0
        %246 = vmatpush1.msra.mxu0 0.0
        %247 = vmatprep.mubr.f32.mxu0 0.0
        %248 = vmatmul.mubr.f32.gmra.mrb[0].mxu0 %v181
        %v249 = vpop.f32.mrb[0].mxu0
        %v250 = vadd.f32 0.0, %v249
        %v251 = vpop.f32.mrb[0].mxu0
        %252 = vdwg.mxu0
        %v253 = vadd.f32 %v182, %v250
        %vm254 = vcmask 261120
        %255 = vst.msk [vmem:[#allocation2] sm:$0xff] %vm254, %v253
        %v256 = vld [vmem:[#allocation3] sm:$0xff]
        %257 = vadd.xlane.f32.xlu0 %v181
        %v258 = vpop.xlane.xlu0 %257
        %v259 = vadd.f32 %v256, %v258
        %vm260 = vcmask 7168
        %261 = vst.msk [vmem:[#allocation3] sm:$0xff] %vm260, %v259
        %v262 = vld [vmem:[#allocation4] sm:$0x1]
        %v263 = vmul.f32 %v156, %v156
        %v264 = vmul.f32 %v157, %v157
        %v265 = vmul.f32 %v158, %v158
        %v266 = vmul.f32 %v159, %v159
        %v267 = vmul.f32 %v160, %v160
        %v268 = vmul.f32 %v161, %v161
        %v269 = vmul.f32 %v162, %v162
        %v270 = vmul.f32 %v163, %v163
        %v271 = vmul.f32 %v164, %v164
        %v272 = vmul.f32 %v165, %v165
        %v273 = vmul.f32 %v166, %v166
        %v274 = vmul.f32 %v167, %v167
        %v275 = vmul.f32 %v168, %v168
        %v276 = vmul.f32 %v169, %v169
        %v277 = vmul.f32 %v170, %v170
        %v278 = vmul.f32 %v171, %v171
        %v279 = vsel %vm254, %v263, 0.0
        %v280 = vsel %vm254, %v264, 0.0
        %v281 = vadd.f32 %v279, %v280
        %v282 = vsel %vm254, %v265, 0.0
        %v283 = vadd.f32 %v281, %v282
        %v284 = vsel %vm254, %v266, 0.0
        %v285 = vadd.f32 %v283, %v284
        %v286 = vsel %vm254, %v267, 0.0
        %v287 = vadd.f32 %v285, %v286
        %v288 = vsel %vm254, %v268, 0.0
        %v289 = vadd.f32 %v287, %v288
        %v290 = vsel %vm254, %v269, 0.0
        %v291 = vadd.f32 %v289, %v290
        %v292 = vsel %vm254, %v270, 0.0
        %v293 = vadd.f32 %v291, %v292
        %v294 = vsel %vm254, %v271, 0.0
        %v295 = vadd.f32 %v293, %v294
        %v296 = vsel %vm254, %v272, 0.0
        %v297 = vadd.f32 %v295, %v296
        %v298 = vsel %vm254, %v273, 0.0
        %v299 = vadd.f32 %v297, %v298
        %v300 = vsel %vm254, %v274, 0.0
        %v301 = vadd.f32 %v299, %v300
        %v302 = vsel %vm254, %v275, 0.0
        %v303 = vadd.f32 %v301, %v302
        %v304 = vsel %vm254, %v276, 0.0
        %v305 = vadd.f32 %v303, %v304
        %v306 = vsel %vm254, %v277, 0.0
        %v307 = vadd.f32 %v305, %v306
        %v308 = vsel %vm254, %v278, 0.0
        %v309 = vadd.f32 %v307, %v308
        %v310 = vrot.slane %v309, 4
        %v311 = vadd.f32 %v309, %v310
        %v312 = vrot.slane %v311, 2
        %v313 = vadd.f32 %v311, %v312
        %v314 = vrot.slane %v313, 1
        %v315 = vadd.f32 %v313, %v314
        %v316 = vadd.f32 %v262, %v315
        %vm317 = vcmask 253952
        %318 = vst.msk [vmem:[#allocation4] sm:$0x1] %vm317, %v316
        %p319 = scmp.eq.s32.totalorder %s14, 2
        // Predicated region
        $region33: #{tpu_custom_call.1} parent=27 // pred_check
          %p320 = pneg %p319
        $region34: #{tpu_custom_call.1} parent=27 // pred_check_branch
          %322 = sbr.rel (%p320) target = $region36
        $region35: #{tpu_custom_call.1} parent=27 // pred_region
          %v323 = vld [vmem:[#allocation2] sm:$0xff]
          %v324 = vld [vmem:[#allocation3] sm:$0xff]
          %v325 = vsel %vm254, %v323, 0.0
          %v326 = vrot.slane %v325, 4
          %v327 = vadd.f32 %v325, %v326
          %v328 = vrot.slane %v327, 2
          %v329 = vadd.f32 %v327, %v328
          %v330 = vrot.slane %v329, 1
          %v331 = vadd.f32 %v329, %v330
          %v332 = vmul.f32 %v331, %v331
          %v333 = vsel %vm317, %v332, 0.0
          %334 = vadd.xlane.f32.xlu0 %v333
          %v335 = vpop.xlane.xlu0 %334
          %v336 = vrot.slane %v335, 4
          %v337 = vadd.f32 %v335, %v336
          %v338 = vrot.slane %v337, 2
          %v339 = vadd.f32 %v337, %v338
          %v340 = vrot.slane %v339, 1
          %v341 = vadd.f32 %v339, %v340
          %s342 = vtos %v341
          %v343 = vstv %s342
          %v344 = vrcp.pop 90000.0
          %v345 = vmul.f32 %v343, %v344
          %v346 = vld [vmem:[#allocation4] sm:$0x1]
          %v347 = vsel %vm317, %v346, 0.0
          %348 = vadd.xlane.f32.xlu0 %v347
          %v349 = vpop.xlane.xlu0 %348
          %v350 = vrot.slane %v349, 4
          %v351 = vadd.f32 %v349, %v350
          %v352 = vrot.slane %v351, 2
          %v353 = vadd.f32 %v351, %v352
          %v354 = vrot.slane %v353, 1
          %v355 = vadd.f32 %v353, %v354
          %s356 = vtos %v355
          %v357 = vstv %s356
          %v358 = vrcp.pop 300.0
          %v359 = vmul.f32 %v357, %v358
          %v360 = vsub.f32 %v359, %v345
          %v361 = vmul.f32 %v323, %v323
          %v362 = vsel %vm254, %v361, 0.0
          %363 = vadd.xlane.f32.xlu0 %v362
          %v364 = vpop.xlane.xlu0 %363
          %vm365 = vcmp.gt.f32.partialorder %v324, 0.5
          %v366 = vmax.f32 %v324, 1.0
          %v367 = vrcp.pop %v366
          %v368 = vmul.f32 1.0, %v367
          %v369 = vsel %vm365, %v368, 0.0
          %v370 = vmul.f32 %v369, %v364
          %v371 = vsel %vm260, %v370, 0.0
          %372 = vadd.xlane.f32.xlu0 %v371
          %v373 = vpop.xlane.xlu0 %372
          %v374 = vrot.slane %v373, 4
          %v375 = vadd.f32 %v373, %v374
          %v376 = vrot.slane %v375, 2
          %v377 = vadd.f32 %v375, %v376
          %v378 = vrot.slane %v377, 1
          %v379 = vadd.f32 %v377, %v378
          %s380 = vtos %v379
          %v381 = vstv %s380
          %v382 = vmul.f32 %v381, %v358
          %v383 = vsub.f32 %v382, %v345
          %v384 = vrcp.pop %v383
          %v385 = vmul.f32 %v360, %v384
          %vm386 = vcmask 0
          %387 = vst.msk [vmem:[#allocation5] sm:$0x1] %vm386, %v385
        $region36: #{tpu_custom_call.1} parent=27 // pred_fallthru
          _
        // Predicated region
        $region37: #{tpu_custom_call.1} parent=27 // pred_check
          %p388 = pneg %p79
        $region38: #{tpu_custom_call.1} parent=27 // pred_check_branch
          %390 = sbr.rel (%p388) target = $region40
        $region39: #{tpu_custom_call.1} parent=27 // pred_region
          %s392 = ssub.s32 16, 16
          %393 = vsyncadd [#allocation6], %s392
          %s395 = sshll.u32 [#allocation5], 4
          %s396 = int_to_ptr.vmem [resolvable:$true] %s395
          %398 = dma.vmem_to_hbm [thread:$0]  %s396, 16, %s2, [#allocation6]
        $region40: #{tpu_custom_call.1} parent=27 // pred_fallthru
          _
        // Predicated region
        $region41: #{tpu_custom_call.1} parent=27 // pred_check
          %p399 = pneg %p79
        $region42: #{tpu_custom_call.1} parent=27 // pred_check_branch
          %401 = sbr.rel (%p399) target = $region44
        $region43: #{tpu_custom_call.1} parent=27 // pred_region
          %402 = dma.done [#allocation6], 16
        $region44: #{tpu_custom_call.1} parent=27 // pred_fallthru
          _
      $region28: #{tpu_custom_call.1} parent=5 // pred_fallthru
        _
      %p403 = scmp.le.s32.totalorder 2, %s9
      // Predicated region
      $region45: #{tpu_custom_call.1} parent=5 // pred_check
        %p404 = pneg %p403
      $region46: #{tpu_custom_call.1} parent=5 // pred_check_branch
        %406 = sbr.rel (%p404) target = $region48
      $region47: #{tpu_custom_call.1} parent=5 // pred_region
        %s407 = ssub.s32 %s9, 2
      $region48: #{tpu_custom_call.1} parent=5 // pred_fallthru
        _
    $region6: #{tpu_custom_call.1} parent=1 // loop_footer
      %s13 = sadd.s32 1, %s9
    $region7: #{tpu_custom_call.1} parent=1 // loop_footer_branch
      %8 = sbr.rel target = $region3
    $region8: #{tpu_custom_call.1} parent=1 // loop_exit
      _
    %408 = vsyncpa [#allocation6], 1
    %s409 = scalar_lea.sflag [#allocation6], 1
    %410 = vsyncpa %s409, 1

</llo_original>
